<compile_context>
chip_gen: v7x
topology: tpu7x:2x2x1
jax: 0.10.0
libtpu: 0.0.40
codegen_flags: <defaults>
</compile_context>

<pallas_src>
import functools

import jax
import jax.numpy as jnp
from jax.experimental import pallas as pl
from jax.experimental.pallas import tpu as pltpu

LANE = 128                      # vreg lane width
SUBLANE = 8                     # vreg sublane count (fp32)
MAX_BATCH_TILE = 1024           # large tiles amortize ~0.35us per grid step
_DEFAULT_VMEM_LIMIT = 30 << 20  # stay under the 32 MiB scoped default unless needed


def _round_up(x, m):
    return ((x + m - 1) // m) * m


def _cdiv(a, b):
    return -(-a // b)


# ----------------------------- Pallas kernel ------------------------------ #
def _fused_mlp_kernel(x_ref, w_in_ref, b_in_ref, *rest, num_hidden_layer: int):
    """One batch-tile of the whole MLP (weights resident in VMEM).

    x_ref:    (TB, IN)           IN = real (unpadded) input feature width
    w_in_ref: (IN, H_p)  bf16    b_in_ref: (1, H_p)  f32
    [w_hid_ref: (L, H_p, H_p) bf16, b_hid_ref: (L, 1, H_p) f32]   (if L > 0)
    w_out_ref:(H_p, OUT_p) bf16  b_out_ref:(1, OUT_p) f32
    o_ref:    (TB, OUT_p)
    """
    if num_hidden_layer > 0:
        w_hid_ref, b_hid_ref, w_out_ref, b_out_ref, o_ref = rest
    else:
        w_out_ref, b_out_ref, o_ref = rest
        w_hid_ref = b_hid_ref = None

    cdt = w_in_ref.dtype          # MXU input dtype (bf16 by default)

    # linear_in + ReLU: bf16 MXU inputs, f32 accumulation, f32 epilogue.
    h = jnp.dot(x_ref[...].astype(cdt), w_in_ref[...],
                preferred_element_type=jnp.float32)
    h = jnp.maximum(h + b_in_ref[...], 0.0)           # (1, H_p) row broadcast

    # Hidden Linear + ReLU blocks, statically unrolled; activation stays in VMEM.
    for l in range(num_hidden_layer):
        h = jnp.dot(h.astype(cdt), w_hid_ref[l],
                    preferred_element_type=jnp.float32)
        h = jnp.maximum(h + b_hid_ref[l], 0.0)

    # linear_out (no activation).
    y = jnp.dot(h.astype(cdt), w_out_ref[...],
                preferred_element_type=jnp.float32)
    o_ref[...] = (y + b_out_ref[...]).astype(o_ref.dtype)


def fused_critic_mlp(x, w_in, b_in, w_hid, b_hid, w_out, b_out,
                     *, num_hidden_layer: int, batch_tile: int, out_dtype=None):
    """Run the fused MLP. x: (B_p, IN) with B_p % batch_tile == 0."""
    B_p, IN = x.shape
    H_p = w_in.shape[1]
    OUT_p = w_out.shape[1]
    out_dtype = x.dtype if out_dtype is None else out_dtype
    assert B_p % batch_tile == 0
    grid = (B_p // batch_tile,)

    kernel = functools.partial(_fused_mlp_kernel,
                               num_hidden_layer=num_hidden_layer)

    # Resident (constant index_map) blocks: single-buffered to halve weight VMEM.
    resident = functools.partial(pl.BlockSpec,
                                 pipeline_mode=pl.Buffered(buffer_count=1))

    in_specs = [
        pl.BlockSpec((batch_tile, IN), lambda i: (i, 0)),   # x, real feature width
        resident((IN, H_p), lambda i: (0, 0)),
        resident((1, H_p), lambda i: (0, 0)),
    ]
    inputs = [x, w_in, b_in]
    if num_hidden_layer > 0:
        L = w_hid.shape[0]
        in_specs += [
            resident((L, H_p, H_p), lambda i: (0, 0, 0)),
            resident((L, 1, H_p), lambda i: (0, 0, 0)),
        ]
        inputs += [w_hid, b_hid]
    in_specs += [
        resident((H_p, OUT_p), lambda i: (0, 0)),
        resident((1, OUT_p), lambda i: (0, 0)),
    ]
    inputs += [w_out, b_out]

    flops = 2 * B_p * (IN * H_p + num_hidden_layer * H_p * H_p + H_p * OUT_p)
    param_bytes = sum(a.size * a.dtype.itemsize for a in inputs[1:])
    out_isz = jnp.dtype(out_dtype).itemsize
    bytes_accessed = (param_bytes
                      + B_p * IN * x.dtype.itemsize      # x read
                      + B_p * OUT_p * out_isz)           # out write

    # Rough VMEM estimate: single-buffered weights + double-buffered x/out tiles
    # + f32 activation intermediates.  Only raise the scoped limit when needed.
    vmem_estimate = (param_bytes
                     + 2 * batch_tile * IN * x.dtype.itemsize
                     + 2 * batch_tile * OUT_p * out_isz
                     + 4 * batch_tile * max(H_p, OUT_p) * 4)
    compiler_kwargs = dict(dimension_semantics=("parallel",))
    if vmem_estimate > _DEFAULT_VMEM_LIMIT:
        # TODO(synk): if this approaches v7x's 64 MiB physical VMEM, stream the
        # hidden stack as (1, H_p, H_p) blocks over an extra "arbitrary" grid
        # axis instead of keeping the whole (L, H_p, H_p) block resident.
        compiler_kwargs["vmem_limit_bytes"] = int(
            min(vmem_estimate * 5 // 4, 64 << 20))

    return pl.pallas_call(
        kernel,
        out_shape=jax.ShapeDtypeStruct((B_p, OUT_p), out_dtype),
        grid=grid,
        in_specs=in_specs,
        out_specs=pl.BlockSpec((batch_tile, OUT_p), lambda i: (i, 0)),
        compiler_params=pltpu.CompilerParams(**compiler_kwargs),
        cost_estimate=pl.CostEstimate(
            flops=flops, transcendentals=0, bytes_accessed=bytes_accessed),
    )(*inputs)


# --------------------------- parameter handling ---------------------------- #
def init_critic_params(key, input_size, output_size, hidden_size,
                       num_hidden_layer=0, dtype=jnp.float32):
    """Unpadded params, weights stored (in_features, out_features)."""
    def _linear_init(k, fan_in, fan_out):
        kw, kb = jax.random.split(k)
        bound = 1.0 / (fan_in ** 0.5)
        w = jax.random.uniform(kw, (fan_in, fan_out), dtype, -bound, bound)
        b = jax.random.uniform(kb, (1, fan_out), dtype, -bound, bound)
        return w, b

    keys = jax.random.split(key, 2 + num_hidden_layer)
    return {
        "linear_in": _linear_init(keys[0], input_size, hidden_size),
        "linear_hid": [_linear_init(keys[1 + i], hidden_size, hidden_size)
                       for i in range(num_hidden_layer)],
        "linear_out": _linear_init(keys[1 + num_hidden_layer],
                                   hidden_size, output_size),
    }


def pad_critic_params(params, input_size, output_size, hidden_size,
                      num_hidden_layer, compute_dtype=jnp.bfloat16):
    """Zero-pad the output (lane) dims to multiples of 128; cast weights to bf16.

    Zero padding keeps the math exact: padded activation columns stay 0 through
    matmul, bias-add and ReLU.  w_in keeps its REAL leading (input) dim so x
    never needs lane padding.  Biases stay f32 (f32 epilogue in the kernel).
    """
    H_p = _round_up(hidden_size, LANE)
    OUT_p = _round_up(output_size, LANE)

    def pad2(a, r, c, dt):
        return jnp.pad(a, ((0, r - a.shape[0]), (0, c - a.shape[1]))).astype(dt)

    w_in, b_in = params["linear_in"]
    w_out, b_out = params["linear_out"]
    padded = {
        "w_in": pad2(w_in, input_size, H_p, compute_dtype),
        "b_in": pad2(b_in, 1, H_p, jnp.float32),
        "w_out": pad2(w_out, H_p, OUT_p, compute_dtype),
        "b_out": pad2(b_out, 1, OUT_p, jnp.float32),
    }
    if num_hidden_layer > 0:
        padded["w_hid"] = jnp.stack(
            [pad2(w, H_p, H_p, compute_dtype) for w, _ in params["linear_hid"]])
        padded["b_hid"] = jnp.stack(
            [pad2(b, 1, H_p, jnp.float32) for _, b in params["linear_hid"]])
    return padded


# --------------------------- Critic forward pass --------------------------- #
def _choose_batch_tiling(batch):
    """Return (padded_batch, batch_tile).

    >=2 grid steps whenever batch > 8 (so both v7x TensorCores get work) while
    capping tiles at MAX_BATCH_TILE and sizing them adaptively to avoid large
    row padding at awkward batch sizes.
    """
    b8 = _round_up(batch, SUBLANE)
    if b8 <= SUBLANE:
        return b8, b8
    n_tiles = max(2, _cdiv(b8, MAX_BATCH_TILE))
    tile = _round_up(_cdiv(b8, n_tiles), SUBLANE)
    n_tiles = max(2, _cdiv(b8, tile))
    return tile * n_tiles, tile


def critic_forward(padded_params, x, *, output_size, num_hidden_layer):
    """x: (batch, input_size) -> (batch, output_size). Matches Critic.forward."""
    batch, _ = x.shape
    B_p, batch_tile = _choose_batch_tiling(batch)
    if B_p != batch:
        x = jnp.pad(x, ((0, B_p - batch), (0, 0)))   # rows only; features unpadded

    out_p = fused_critic_mlp(
        x,
        padded_params["w_in"], padded_params["b_in"],
        padded_params.get("w_hid"), padded_params.get("b_hid"),
        padded_params["w_out"], padded_params["b_out"],
        num_hidden_layer=num_hidden_layer,
        batch_tile=batch_tile,
    )
    return out_p[:batch, :output_size]


# ----------------------------------- main ---------------------------------- #
if __name__ == "__main__":
    input_size, output_size, hidden_size = 16, 4, 32
    num_hidden_layer = 2
    batch = 8

    key = jax.random.PRNGKey(0)
    key_params, key_x = jax.random.split(key)

    params = init_critic_params(key_params, input_size, output_size,
                                hidden_size, num_hidden_layer)
    padded_params = pad_critic_params(params, input_size, output_size,
                                      hidden_size, num_hidden_layer,
                                      compute_dtype=jnp.bfloat16)
    x = jax.random.normal(key_x, (batch, input_size), jnp.float32)

    fwd = jax.jit(functools.partial(critic_forward,
                                    output_size=output_size,
                                    num_hidden_layer=num_hidden_layer))
    out = jax.block_until_ready(fwd(padded_params, x))
    assert out.shape == (batch, output_size)

    # Reference with the same numerics recipe as the kernel
    # (bf16 MXU inputs, f32 accumulation, f32 epilogue).
    def _ref(params, x, cdt):
        def dense(h, wb, relu):
            w, b = wb
            y = jnp.dot(h.astype(cdt), w.astype(cdt),
                        preferred_element_type=jnp.float32) + b.astype(jnp.float32)
            return jnp.maximum(y, 0.0) if relu else y
        h = dense(x, params["linear_in"], True)
        for wb in params["linear_hid"]:
            h = dense(h, wb, True)
        return dense(h, params["linear_out"], False)

    ref_bf16 = _ref(params, x, jnp.bfloat16)   # same quantization as the kernel
    ref_f32 = _ref(params, x, jnp.float32)     # full-precision sanity check
    assert jnp.allclose(out, ref_bf16, atol=2e-3, rtol=2e-3), \
        float(jnp.max(jnp.abs(out - ref_bf16)))
    assert jnp.allclose(out, ref_f32, atol=5e-2, rtol=5e-2)

    print("KERNEL_OK")
</pallas_src>

<mosaic_0001>
module attributes {stable_mosaic.version = 11 : i64} {
  func.func @_fused_mlp_kernel(%arg0: i32, %arg1: memref<8x16xf32, #tpu.memory_space<vmem>>, %arg2: memref<16x128xbf16, #tpu.memory_space<vmem>>, %arg3: memref<1x128xf32, #tpu.memory_space<vmem>>, %arg4: memref<2x128x128xbf16, #tpu.memory_space<vmem>>, %arg5: memref<2x1x128xf32, #tpu.memory_space<vmem>>, %arg6: memref<128x128xbf16, #tpu.memory_space<vmem>>, %arg7: memref<1x128xf32, #tpu.memory_space<vmem>>, %arg8: memref<8x128xf32, #tpu.memory_space<vmem>>) attributes {dimension_semantics = [#tpu.dimension_semantics<parallel>], iteration_bounds = array<i64: 1>, scalar_prefetch = 0 : i64, scratch_operands = 0 : i64, tpu.core_type = #tpu.core_type<tc>, window_params = [{transform_indices = @transform_0, window_bounds = array<i64: 8, 16>}, {pipeline_mode = #tpu.pipeline_mode<synchronous>, transform_indices = @transform_1, window_bounds = array<i64: 16, 128>}, {pipeline_mode = #tpu.pipeline_mode<synchronous>, transform_indices = @transform_2, window_bounds = array<i64: 1, 128>}, {pipeline_mode = #tpu.pipeline_mode<synchronous>, transform_indices = @transform_3, window_bounds = array<i64: 2, 128, 128>}, {pipeline_mode = #tpu.pipeline_mode<synchronous>, transform_indices = @transform_4, window_bounds = array<i64: 2, 1, 128>}, {pipeline_mode = #tpu.pipeline_mode<synchronous>, transform_indices = @transform_5, window_bounds = array<i64: 128, 128>}, {pipeline_mode = #tpu.pipeline_mode<synchronous>, transform_indices = @transform_6, window_bounds = array<i64: 1, 128>}, {transform_indices = @transform_7, window_bounds = array<i64: 8, 128>}]} {
    %c0 = arith.constant 0 : index
    %c0_0 = arith.constant 0 : index
    %0 = vector.load %arg1[%c0, %c0_0] : memref<8x16xf32, #tpu.memory_space<vmem>>, vector<8x16xf32>
    %1 = arith.truncf %0 : vector<8x16xf32> to vector<8x16xbf16>
    %c0_1 = arith.constant 0 : index
    %c0_2 = arith.constant 0 : index
    %2 = vector.load %arg2[%c0_1, %c0_2] : memref<16x128xbf16, #tpu.memory_space<vmem>>, vector<16x128xbf16>
    %cst = arith.constant dense<0.000000e+00> : vector<8x128xf32>
    %3 = tpu.matmul %1, %2, %cst {dimension_numbers = #tpu.dot_dimension_numbers<[1], [0], [0], [1], [0, 0, 1, 1], [], []>} : vector<8x16xbf16>, vector<16x128xbf16>, vector<8x128xf32> -> vector<8x128xf32>
    %c0_3 = arith.constant 0 : index
    %c0_4 = arith.constant 0 : index
    %4 = vector.load %arg3[%c0_3, %c0_4] : memref<1x128xf32, #tpu.memory_space<vmem>>, vector<1x128xf32>
    %5 = vector.broadcast %4 : vector<1x128xf32> to vector<8x128xf32>
    %6 = arith.addf %3, %5 : vector<8x128xf32>
    %cst_5 = arith.constant 0.000000e+00 : f32
    %7 = vector.broadcast %cst_5 : f32 to vector<8x128xf32>
    %8 = arith.maximumf %6, %7 : vector<8x128xf32>
    %9 = arith.truncf %8 : vector<8x128xf32> to vector<8x128xbf16>
    %c0_6 = arith.constant 0 : index
    %c0_7 = arith.constant 0 : index
    %c0_8 = arith.constant 0 : index
    %10 = vector.load %arg4[%c0_6, %c0_7, %c0_8] : memref<2x128x128xbf16, #tpu.memory_space<vmem>>, vector<1x128x128xbf16>
    %11 = vector.shape_cast %10 : vector<1x128x128xbf16> to vector<128x128xbf16>
    %cst_9 = arith.constant dense<0.000000e+00> : vector<8x128xf32>
    %12 = tpu.matmul %9, %11, %cst_9 {dimension_numbers = #tpu.dot_dimension_numbers<[1], [0], [0], [1], [0, 0, 1, 1], [], []>} : vector<8x128xbf16>, vector<128x128xbf16>, vector<8x128xf32> -> vector<8x128xf32>
    %c0_10 = arith.constant 0 : index
    %c0_11 = arith.constant 0 : index
    %c0_12 = arith.constant 0 : index
    %13 = vector.load %arg5[%c0_10, %c0_11, %c0_12] : memref<2x1x128xf32, #tpu.memory_space<vmem>>, vector<1x1x128xf32>
    %14 = vector.shape_cast %13 : vector<1x1x128xf32> to vector<1x128xf32>
    %15 = vector.broadcast %14 : vector<1x128xf32> to vector<8x128xf32>
    %16 = arith.addf %12, %15 : vector<8x128xf32>
    %cst_13 = arith.constant 0.000000e+00 : f32
    %17 = vector.broadcast %cst_13 : f32 to vector<8x128xf32>
    %18 = arith.maximumf %16, %17 : vector<8x128xf32>
    %19 = arith.truncf %18 : vector<8x128xf32> to vector<8x128xbf16>
    %c1 = arith.constant 1 : index
    %c0_14 = arith.constant 0 : index
    %c0_15 = arith.constant 0 : index
    %20 = vector.load %arg4[%c1, %c0_14, %c0_15] : memref<2x128x128xbf16, #tpu.memory_space<vmem>>, vector<1x128x128xbf16>
    %21 = vector.shape_cast %20 : vector<1x128x128xbf16> to vector<128x128xbf16>
    %cst_16 = arith.constant dense<0.000000e+00> : vector<8x128xf32>
    %22 = tpu.matmul %19, %21, %cst_16 {dimension_numbers = #tpu.dot_dimension_numbers<[1], [0], [0], [1], [0, 0, 1, 1], [], []>} : vector<8x128xbf16>, vector<128x128xbf16>, vector<8x128xf32> -> vector<8x128xf32>
    %c1_17 = arith.constant 1 : index
    %c0_18 = arith.constant 0 : index
    %c0_19 = arith.constant 0 : index
    %23 = vector.load %arg5[%c1_17, %c0_18, %c0_19] : memref<2x1x128xf32, #tpu.memory_space<vmem>>, vector<1x1x128xf32>
    %24 = vector.shape_cast %23 : vector<1x1x128xf32> to vector<1x128xf32>
    %25 = vector.broadcast %24 : vector<1x128xf32> to vector<8x128xf32>
    %26 = arith.addf %22, %25 : vector<8x128xf32>
    %cst_20 = arith.constant 0.000000e+00 : f32
    %27 = vector.broadcast %cst_20 : f32 to vector<8x128xf32>
    %28 = arith.maximumf %26, %27 : vector<8x128xf32>
    %29 = arith.truncf %28 : vector<8x128xf32> to vector<8x128xbf16>
    %c0_21 = arith.constant 0 : index
    %c0_22 = arith.constant 0 : index
    %30 = vector.load %arg6[%c0_21, %c0_22] : memref<128x128xbf16, #tpu.memory_space<vmem>>, vector<128x128xbf16>
    %cst_23 = arith.constant dense<0.000000e+00> : vector<8x128xf32>
    %31 = tpu.matmul %29, %30, %cst_23 {dimension_numbers = #tpu.dot_dimension_numbers<[1], [0], [0], [1], [0, 0, 1, 1], [], []>} : vector<8x128xbf16>, vector<128x128xbf16>, vector<8x128xf32> -> vector<8x128xf32>
    %c0_24 = arith.constant 0 : index
    %c0_25 = arith.constant 0 : index
    %32 = vector.load %arg7[%c0_24, %c0_25] : memref<1x128xf32, #tpu.memory_space<vmem>>, vector<1x128xf32>
    %33 = vector.broadcast %32 : vector<1x128xf32> to vector<8x128xf32>
    %34 = arith.addf %31, %33 : vector<8x128xf32>
    %c0_26 = arith.constant 0 : index
    %c0_27 = arith.constant 0 : index
    %35 = vector.load %arg8[%c0_26, %c0_27] : memref<8x128xf32, #tpu.memory_space<vmem>>, vector<8x128xf32>
    tpu.vector_store %arg8[%c0_26, %c0_27], %34 {strides = array<i32>} : memref<8x128xf32, #tpu.memory_space<vmem>>, vector<8x128xf32>,
    return
  }
  func.func @transform_0(%arg0: i32) -> (i32, i32) {
    %c0_i32 = arith.constant 0 : i32
    %c0_i32_0 = arith.constant 0 : i32
    return %arg0, %c0_i32 : i32, i32
  }
  func.func @transform_1(%arg0: i32) -> (i32, i32) {
    %c0_i32 = arith.constant 0 : i32
    %c0_i32_0 = arith.constant 0 : i32
    %c0_i32_1 = arith.constant 0 : i32
    return %c0_i32, %c0_i32_0 : i32, i32
  }
  func.func @transform_2(%arg0: i32) -> (i32, i32) {
    %c0_i32 = arith.constant 0 : i32
    %c0_i32_0 = arith.constant 0 : i32
    %c0_i32_1 = arith.constant 0 : i32
    return %c0_i32, %c0_i32_0 : i32, i32
  }
  func.func @transform_3(%arg0: i32) -> (i32, i32, i32) {
    %c0_i32 = arith.constant 0 : i32
    %c0_i32_0 = arith.constant 0 : i32
    %c0_i32_1 = arith.constant 0 : i32
    %c0_i32_2 = arith.constant 0 : i32
    return %c0_i32, %c0_i32_0, %c0_i32_1 : i32, i32, i32
  }
  func.func @transform_4(%arg0: i32) -> (i32, i32, i32) {
    %c0_i32 = arith.constant 0 : i32
    %c0_i32_0 = arith.constant 0 : i32
    %c0_i32_1 = arith.constant 0 : i32
    %c0_i32_2 = arith.constant 0 : i32
    return %c0_i32, %c0_i32_0, %c0_i32_1 : i32, i32, i32
  }
  func.func @transform_5(%arg0: i32) -> (i32, i32) {
    %c0_i32 = arith.constant 0 : i32
    %c0_i32_0 = arith.constant 0 : i32
    %c0_i32_1 = arith.constant 0 : i32
    return %c0_i32, %c0_i32_0 : i32, i32
  }
  func.func @transform_6(%arg0: i32) -> (i32, i32) {
    %c0_i32 = arith.constant 0 : i32
    %c0_i32_0 = arith.constant 0 : i32
    %c0_i32_1 = arith.constant 0 : i32
    return %c0_i32, %c0_i32_0 : i32, i32
  }
  func.func @transform_7(%arg0: i32) -> (i32, i32) {
    %c0_i32 = arith.constant 0 : i32
    %c0_i32_0 = arith.constant 0 : i32
    return %arg0, %c0_i32 : i32, i32
  }
}

</mosaic_0001>

<llo_original>
// kernel: critic_forward.1
$region0: #{critic_forward.1}
  #allocation0 [shape = 'u32[]', space=smem, size = 0x4, offset = 0x4, fixed_abs, tag = 'smem constant byte address 0x4 - core index']
  #allocation1 [shape = 'u32[144,128]{1,0:T(1,128)}', space=vmem, size = 0x12000, scoped, tag = 'internal scratch']
  %s0 = inlined_call_operand.vmem [shape: f32[8,16], index: 0, kind: input, shape index: {}]
  %s1 = inlined_call_operand.hbm [shape: bf16[16,128], index: 1, kind: input, shape index: {}]
  %s2 = inlined_call_operand.vmem [shape: f32[1,128], index: 2, kind: input, shape index: {}]
  %s3 = inlined_call_operand.hbm [shape: bf16[2,128,128], index: 3, kind: input, shape index: {}]
  %s4 = inlined_call_operand.hbm [shape: f32[2,1,128], index: 4, kind: input, shape index: {}]
  %s5 = inlined_call_operand.hbm [shape: bf16[128,128], index: 5, kind: input, shape index: {}]
  %s6 = inlined_call_operand.vmem [shape: f32[1,128], index: 6, kind: input, shape index: {}]
  %s7 = inlined_call_operand.vmem [shape: f32[8,128], index: 7, kind: output, shape index: {}]
  %s8 = sld [smem:[#allocation0]]
  $region54: #{critic_forward.1} parent=0
    _
  %s10 = ssub.s32 1, %s8
  %s11 = scalar_select 0, %s10, %s8
  $region1: #{critic_forward.1} parent=0
    #allocation2 [shape = 'u8[4096]{0}', space=vmem, size = 0x1000, scoped, tag = 'input window, operand 1, single buffered']
    #allocation3 [shape = 's32[1]{0}', space=sflag, size = 0x4, scoped, tag = 'scoped memory for critic_forward.1']
    #allocation4 [shape = 'u8[65536]{0}', space=vmem, size = 0x10000, scoped, tag = 'input window, operand 3, single buffered']
    #allocation5 [shape = 's32[1]{0}', space=sflag, size = 0x4, scoped, tag = 'scoped memory for critic_forward.1']
    #allocation6 [shape = 'u8[1024]{0}', space=vmem, size = 0x400, scoped, tag = 'input window, operand 4, single buffered']
    #allocation7 [shape = 'u8[32768]{0}', space=vmem, size = 0x8000, scoped, tag = 'input window, operand 5, single buffered']
    #allocation8 [shape = 's32[1]{0}', space=sflag, size = 0x4, scoped, tag = 'scoped memory for critic_forward.1']
    %12 = vsyncpa [#allocation3], 0
    %13 = vsyncpa [#allocation5], 0
    %14 = vsyncpa [#allocation8], 0
    // Predicated region
    $region2: #{critic_forward.1} parent=1 // pred_check
      _
    $region3: #{critic_forward.1} parent=1 // pred_check_branch
      %16 = sbr.rel (0) target = $region5
    $region4: #{critic_forward.1} parent=1 // pred_region
      _
    $region5: #{critic_forward.1} parent=1 // pred_fallthru
      _
    // Predicated region
    $region6: #{critic_forward.1} parent=1 // pred_check
      _
    $region7: #{critic_forward.1} parent=1 // pred_check_branch
      %18 = sbr.rel (0) target = $region9
    $region8: #{critic_forward.1} parent=1 // pred_region
      %s20 = ssub.s32 128, 128
      %21 = vsyncadd [#allocation3], %s20
      %s22 = sshll.u32 [#allocation2], 4
      %s23 = int_to_ptr.vmem [resolvable:$true] %s22
      %28 = dma.hbm_to_vmem [thread:$0]  %s1, 128, %s23, [#allocation3], 64, 64, 4
    $region9: #{critic_forward.1} parent=1 // pred_fallthru
      _
    // Predicated region
    $region10: #{critic_forward.1} parent=1 // pred_check
      _
    $region11: #{critic_forward.1} parent=1 // pred_check_branch
      %30 = sbr.rel (0) target = $region13
    $region12: #{critic_forward.1} parent=1 // pred_region
      _
    $region13: #{critic_forward.1} parent=1 // pred_fallthru
      _
    // Predicated region
    $region14: #{critic_forward.1} parent=1 // pred_check
      _
    $region15: #{critic_forward.1} parent=1 // pred_check_branch
      %32 = sbr.rel (0) target = $region17
    $region16: #{critic_forward.1} parent=1 // pred_region
      %s34 = ssub.s32 2048, 2048
      %35 = vsyncadd [#allocation5], %s34
      %s36 = sshll.u32 [#allocation4], 4
      %s37 = int_to_ptr.vmem [resolvable:$true] %s36
      %42 = dma.hbm_to_vmem [thread:$0]  %s3, 2048, %s37, [#allocation5], 64, 64, 4
    $region17: #{critic_forward.1} parent=1 // pred_fallthru
      _
    // Predicated region
    $region18: #{critic_forward.1} parent=1 // pred_check
      _
    $region19: #{critic_forward.1} parent=1 // pred_check_branch
      %44 = sbr.rel (0) target = $region21
    $region20: #{critic_forward.1} parent=1 // pred_region
      %s46 = ssub.s32 32, 32
      %47 = vsyncadd [#allocation5], %s46
      %s48 = sshll.u32 [#allocation6], 4
      %s49 = int_to_ptr.vmem [resolvable:$true] %s48
      %54 = dma.hbm_to_vmem [thread:$0]  %s4, 32, %s49, [#allocation5], 16, 16, 1
    $region21: #{critic_forward.1} parent=1 // pred_fallthru
      _
    // Predicated region
    $region22: #{critic_forward.1} parent=1 // pred_check
      _
    $region23: #{critic_forward.1} parent=1 // pred_check_branch
      %56 = sbr.rel (0) target = $region25
    $region24: #{critic_forward.1} parent=1 // pred_region
      %s58 = ssub.s32 1024, 1024
      %59 = vsyncadd [#allocation8], %s58
      %s60 = sshll.u32 [#allocation7], 4
      %s61 = int_to_ptr.vmem [resolvable:$true] %s60
      %66 = dma.hbm_to_vmem [thread:$0]  %s5, 1024, %s61, [#allocation8], 64, 64, 4
    $region25: #{critic_forward.1} parent=1 // pred_fallthru
      _
    // Predicated region
    $region26: #{critic_forward.1} parent=1 // pred_check
      _
    $region27: #{critic_forward.1} parent=1 // pred_check_branch
      %68 = sbr.rel (0) target = $region29
    $region28: #{critic_forward.1} parent=1 // pred_region
      _
    $region29: #{critic_forward.1} parent=1 // pred_fallthru
      _
    // Predicated region
    $region30: #{critic_forward.1} parent=1 // pred_check
      _
    $region31: #{critic_forward.1} parent=1 // pred_check_branch
      %70 = sbr.rel (0) target = $region33
    $region32: #{critic_forward.1} parent=1 // pred_region
      %71 = dma.done [#allocation3], 128
    $region33: #{critic_forward.1} parent=1 // pred_fallthru
      _
    // Predicated region
    $region34: #{critic_forward.1} parent=1 // pred_check
      _
    $region35: #{critic_forward.1} parent=1 // pred_check_branch
      %73 = sbr.rel (0) target = $region37
    $region36: #{critic_forward.1} parent=1 // pred_region
      %74 = dma.done [#allocation5], 2048
    $region37: #{critic_forward.1} parent=1 // pred_fallthru
      _
    // Predicated region
    $region38: #{critic_forward.1} parent=1 // pred_check
      _
    $region39: #{critic_forward.1} parent=1 // pred_check_branch
      %76 = sbr.rel (0) target = $region41
    $region40: #{critic_forward.1} parent=1 // pred_region
      %77 = dma.done [#allocation5], 32
    $region41: #{critic_forward.1} parent=1 // pred_fallthru
      _
    // Predicated region
    $region42: #{critic_forward.1} parent=1 // pred_check
      _
    $region43: #{critic_forward.1} parent=1 // pred_check_branch
      %79 = sbr.rel (0) target = $region45
    $region44: #{critic_forward.1} parent=1 // pred_region
      %80 = dma.done [#allocation8], 1024
    $region45: #{critic_forward.1} parent=1 // pred_fallthru
      _
    %v82 = vld [vmem:[%s0] sm:$0xff]
    %v83 = vpack.c.bf16 %v82, %v82
    %v84 = vld [vmem:[#allocation2] sm:$0xf]
    %v85 = vld [vmem:[#allocation2 + $0x4] sm:$0xf]
    %v86 = vld [vmem:[%s2] sm:$0x1]
    %v88 = vlaneseq
    %v89 = vshrl.u32 %v88, 7
    %v90 = vsub.s32 0, %v89
    %v91 = vrot.slane %v86, %v90
    %v95 = vunpack.c.l.b16 %v84
    %v96 = vunpack.c.l.b16 %v85
    %v97 = vpack.c.b16 %v96, %v95
    %vm99 = vcmask 130048
    %v101 = vsel %vm99, %v83, 0
    %103 = vmatprep.subr.bf16.mxu0 0
    %104 = vmatpush1.bf16.msra.mxu0 %v97
    %105 = vmatprep.subr.bf16.mxu0 0
    %106 = vmatpush1.bf16.msra.mxu0 0
    %107 = vmatprep.subr.bf16.mxu0 0
    %108 = vmatpush1.bf16.msra.mxu0 0
    %109 = vmatprep.subr.bf16.mxu0 0
    %110 = vmatpush1.bf16.msra.mxu0 0
    %111 = vmatprep.subr.bf16.mxu0 0
    %112 = vmatpush1.bf16.msra.mxu0 0
    %113 = vmatprep.subr.bf16.mxu0 0
    %114 = vmatpush1.bf16.msra.mxu0 0
    %115 = vmatprep.subr.bf16.mxu0 0
    %116 = vmatpush1.bf16.msra.mxu0 0
    %117 = vmatprep.subr.bf16.mxu0 0
    %118 = vmatpush1.bf16.msra.mxu0 0
    %119 = vmatprep.subr.bf16.mxu0 0
    %120 = vmatpush1.bf16.msra.mxu0 0
    %121 = vmatprep.subr.bf16.mxu0 0
    %122 = vmatpush1.bf16.msra.mxu0 0
    %123 = vmatprep.subr.bf16.mxu0 0
    %124 = vmatpush1.bf16.msra.mxu0 0
    %125 = vmatprep.subr.bf16.mxu0 0
    %126 = vmatpush1.bf16.msra.mxu0 0
    %127 = vmatprep.subr.bf16.mxu0 0
    %128 = vmatpush1.bf16.msra.mxu0 0
    %129 = vmatprep.subr.bf16.mxu0 0
    %130 = vmatpush1.bf16.msra.mxu0 0
    %131 = vmatprep.subr.bf16.mxu0 0
    %132 = vmatpush1.bf16.msra.mxu0 0
    %133 = vmatprep.subr.bf16.mxu0 0
    %134 = vmatpush1.bf16.msra.mxu0 0
    %135 = vmatprep.mubr.bf16.mxu0 0
    %136 = vmatmul.mubr.bf16.gmra.mrb[0].mxu0 %v101
    %v137 = vpop.f32.mrb[0].mxu0
    %v138 = vadd.f32 %v91, %v137
    %v139 = vpop.f32.mrb[0].mxu0
    %v140 = vpop.f32.mrb[0].mxu0
    %v141 = vpop.f32.mrb[0].mxu0
    %142 = vdwg.mxu0
    %v143 = vmax.f32 %v138, 0.0
    %v144 = vpack.c.bf16 %v143, %v143
    %v145 = vld [vmem:[#allocation4] sm:$0xf]
    %v146 = vld [vmem:[#allocation4 + $0x4] sm:$0xf]
    %v147 = vld [vmem:[#allocation4 + $0x8] sm:$0xf]
    %v148 = vld [vmem:[#allocation4 + $0xc] sm:$0xf]
    %v149 = vld [vmem:[#allocation4 + $0x10] sm:$0xf]
    %v150 = vld [vmem:[#allocation4 + $0x14] sm:$0xf]
    %v151 = vld [vmem:[#allocation4 + $0x18] sm:$0xf]
    %v152 = vld [vmem:[#allocation4 + $0x1c] sm:$0xf]
    %v153 = vld [vmem:[#allocation4 + $0x20] sm:$0xf]
    %v154 = vld [vmem:[#allocation4 + $0x24] sm:$0xf]
    %v155 = vld [vmem:[#allocation4 + $0x28] sm:$0xf]
    %v156 = vld [vmem:[#allocation4 + $0x2c] sm:$0xf]
    %v157 = vld [vmem:[#allocation4 + $0x30] sm:$0xf]
    %v158 = vld [vmem:[#allocation4 + $0x34] sm:$0xf]
    %v159 = vld [vmem:[#allocation4 + $0x38] sm:$0xf]
    %v160 = vld [vmem:[#allocation4 + $0x3c] sm:$0xf]
    %v161 = vld [vmem:[#allocation6] sm:$0x1]
    %v163 = vlaneseq
    %v164 = vshrl.u32 %v163, 7
    %v165 = vsub.s32 0, %v164
    %v166 = vrot.slane %v161, %v165
    %v184 = vunpack.c.l.b16 %v145
    %v185 = vunpack.c.l.b16 %v146
    %v186 = vunpack.c.l.b16 %v147
    %v187 = vunpack.c.l.b16 %v148
    %v188 = vunpack.c.l.b16 %v149
    %v189 = vunpack.c.l.b16 %v150
    %v190 = vunpack.c.l.b16 %v151
    %v191 = vunpack.c.l.b16 %v152
    %v192 = vunpack.c.l.b16 %v153
    %v193 = vunpack.c.l.b16 %v154
    %v194 = vunpack.c.l.b16 %v155
    %v195 = vunpack.c.l.b16 %v156
    %v196 = vunpack.c.l.b16 %v157
    %v197 = vunpack.c.l.b16 %v158
    %v198 = vunpack.c.l.b16 %v159
    %v199 = vunpack.c.l.b16 %v160
    %v200 = vpack.c.b16 %v185, %v184
    %v201 = vpack.c.b16 %v187, %v186
    %v202 = vpack.c.b16 %v189, %v188
    %v203 = vpack.c.b16 %v191, %v190
    %v204 = vpack.c.b16 %v193, %v192
    %v205 = vpack.c.b16 %v195, %v194
    %v206 = vpack.c.b16 %v197, %v196
    %v207 = vpack.c.b16 %v199, %v198
    %216 = vmatprep.subr.bf16.mxu0 0
    %217 = vmatpush1.bf16.msra.mxu0 %v200
    %218 = vmatprep.subr.bf16.mxu0 0
    %219 = vmatpush1.bf16.msra.mxu0 %v201
    %220 = vmatprep.subr.bf16.mxu0 0
    %221 = vmatpush1.bf16.msra.mxu0 %v202
    %222 = vmatprep.subr.bf16.mxu0 0
    %223 = vmatpush1.bf16.msra.mxu0 %v203
    %224 = vmatprep.subr.bf16.mxu0 0
    %225 = vmatpush1.bf16.msra.mxu0 %v204
    %226 = vmatprep.subr.bf16.mxu0 0
    %227 = vmatpush1.bf16.msra.mxu0 %v205
    %228 = vmatprep.subr.bf16.mxu0 0
    %229 = vmatpush1.bf16.msra.mxu0 %v206
    %230 = vmatprep.subr.bf16.mxu0 0
    %231 = vmatpush1.bf16.msra.mxu0 %v207
    %232 = vmatprep.subr.bf16.mxu0 0
    %233 = vmatpush1.bf16.msra.mxu0 0
    %234 = vmatprep.subr.bf16.mxu0 0
    %235 = vmatpush1.bf16.msra.mxu0 0
    %236 = vmatprep.subr.bf16.mxu0 0
    %237 = vmatpush1.bf16.msra.mxu0 0
    %238 = vmatprep.subr.bf16.mxu0 0
    %239 = vmatpush1.bf16.msra.mxu0 0
    %240 = vmatprep.subr.bf16.mxu0 0
    %241 = vmatpush1.bf16.msra.mxu0 0
    %242 = vmatprep.subr.bf16.mxu0 0
    %243 = vmatpush1.bf16.msra.mxu0 0
    %244 = vmatprep.subr.bf16.mxu0 0
    %245 = vmatpush1.bf16.msra.mxu0 0
    %246 = vmatprep.subr.bf16.mxu0 0
    %247 = vmatpush1.bf16.msra.mxu0 0
    %248 = vmatprep.mubr.bf16.mxu0 0
    %249 = vmatmul.mubr.bf16.gmra.mrb[0].mxu0 %v144
    %v250 = vpop.f32.mrb[0].mxu0
    %v251 = vadd.f32 %v166, %v250
    %v252 = vpop.f32.mrb[0].mxu0
    %v253 = vpop.f32.mrb[0].mxu0
    %v254 = vpop.f32.mrb[0].mxu0
    %255 = vdwg.mxu0
    %v256 = vmax.f32 %v251, 0.0
    %v257 = vpack.c.bf16 %v256, %v256
    %s258 = scalar_lea.vmem [#allocation4], 64
    %v259 = vld [vmem:[%s258] sm:$0xf]
    %v260 = vld [vmem:[%s258 + $0x4] sm:$0xf]
    %v261 = vld [vmem:[%s258 + $0x8] sm:$0xf]
    %v262 = vld [vmem:[%s258 + $0xc] sm:$0xf]
    %v263 = vld [vmem:[%s258 + $0x10] sm:$0xf]
    %v264 = vld [vmem:[%s258 + $0x14] sm:$0xf]
    %v265 = vld [vmem:[%s258 + $0x18] sm:$0xf]
    %v266 = vld [vmem:[%s258 + $0x1c] sm:$0xf]
    %v267 = vld [vmem:[%s258 + $0x20] sm:$0xf]
    %v268 = vld [vmem:[%s258 + $0x24] sm:$0xf]
    %v269 = vld [vmem:[%s258 + $0x28] sm:$0xf]
    %v270 = vld [vmem:[%s258 + $0x2c] sm:$0xf]
    %v271 = vld [vmem:[%s258 + $0x30] sm:$0xf]
    %v272 = vld [vmem:[%s258 + $0x34] sm:$0xf]
    %v273 = vld [vmem:[%s258 + $0x38] sm:$0xf]
    %v274 = vld [vmem:[%s258 + $0x3c] sm:$0xf]
    %s275 = scalar_lea.vmem [#allocation6], 1
    %v276 = vld [vmem:[%s275] sm:$0x1]
    %v278 = vlaneseq
    %v279 = vshrl.u32 %v278, 7
    %v280 = vsub.s32 0, %v279
    %v281 = vrot.slane %v276, %v280
    %v299 = vunpack.c.l.b16 %v259
    %v300 = vunpack.c.l.b16 %v260
    %v301 = vunpack.c.l.b16 %v261
    %v302 = vunpack.c.l.b16 %v262
    %v303 = vunpack.c.l.b16 %v263
    %v304 = vunpack.c.l.b16 %v264
    %v305 = vunpack.c.l.b16 %v265
    %v306 = vunpack.c.l.b16 %v266
    %v307 = vunpack.c.l.b16 %v267
    %v308 = vunpack.c.l.b16 %v268
    %v309 = vunpack.c.l.b16 %v269
    %v310 = vunpack.c.l.b16 %v270
    %v311 = vunpack.c.l.b16 %v271
    %v312 = vunpack.c.l.b16 %v272
    %v313 = vunpack.c.l.b16 %v273
    %v314 = vunpack.c.l.b16 %v274
    %v315 = vpack.c.b16 %v300, %v299
    %v316 = vpack.c.b16 %v302, %v301
    %v317 = vpack.c.b16 %v304, %v303
    %v318 = vpack.c.b16 %v306, %v305
    %v319 = vpack.c.b16 %v308, %v307
    %v320 = vpack.c.b16 %v310, %v309
    %v321 = vpack.c.b16 %v312, %v311
    %v322 = vpack.c.b16 %v314, %v313
    %331 = vmatprep.subr.bf16.mxu0 0
    %332 = vmatpush1.bf16.msra.mxu0 %v315
    %333 = vmatprep.subr.bf16.mxu0 0
    %334 = vmatpush1.bf16.msra.mxu0 %v316
    %335 = vmatprep.subr.bf16.mxu0 0
    %336 = vmatpush1.bf16.msra.mxu0 %v317
    %337 = vmatprep.subr.bf16.mxu0 0
    %338 = vmatpush1.bf16.msra.mxu0 %v318
    %339 = vmatprep.subr.bf16.mxu0 0
    %340 = vmatpush1.bf16.msra.mxu0 %v319
    %341 = vmatprep.subr.bf16.mxu0 0
    %342 = vmatpush1.bf16.msra.mxu0 %v320
    %343 = vmatprep.subr.bf16.mxu0 0
    %344 = vmatpush1.bf16.msra.mxu0 %v321
    %345 = vmatprep.subr.bf16.mxu0 0
    %346 = vmatpush1.bf16.msra.mxu0 %v322
    %347 = vmatprep.subr.bf16.mxu0 0
    %348 = vmatpush1.bf16.msra.mxu0 0
    %349 = vmatprep.subr.bf16.mxu0 0
    %350 = vmatpush1.bf16.msra.mxu0 0
    %351 = vmatprep.subr.bf16.mxu0 0
    %352 = vmatpush1.bf16.msra.mxu0 0
    %353 = vmatprep.subr.bf16.mxu0 0
    %354 = vmatpush1.bf16.msra.mxu0 0
    %355 = vmatprep.subr.bf16.mxu0 0
    %356 = vmatpush1.bf16.msra.mxu0 0
    %357 = vmatprep.subr.bf16.mxu0 0
    %358 = vmatpush1.bf16.msra.mxu0 0
    %359 = vmatprep.subr.bf16.mxu0 0
    %360 = vmatpush1.bf16.msra.mxu0 0
    %361 = vmatprep.subr.bf16.mxu0 0
    %362 = vmatpush1.bf16.msra.mxu0 0
    %363 = vmatprep.mubr.bf16.mxu0 0
    %364 = vmatmul.mubr.bf16.gmra.mrb[0].mxu0 %v257
    %v365 = vpop.f32.mrb[0].mxu0
    %v366 = vadd.f32 %v281, %v365
    %v367 = vpop.f32.mrb[0].mxu0
    %v368 = vpop.f32.mrb[0].mxu0
    %v369 = vpop.f32.mrb[0].mxu0
    %370 = vdwg.mxu0
    %v371 = vmax.f32 %v366, 0.0
    %v372 = vpack.c.bf16 %v371, %v371
    %v373 = vld [vmem:[#allocation7] sm:$0xf]
    %v374 = vld [vmem:[#allocation7 + $0x4] sm:$0xf]
    %v375 = vld [vmem:[#allocation7 + $0x8] sm:$0xf]
    %v376 = vld [vmem:[#allocation7 + $0xc] sm:$0xf]
    %v377 = vld [vmem:[#allocation7 + $0x10] sm:$0xf]
    %v378 = vld [vmem:[#allocation7 + $0x14] sm:$0xf]
    %v379 = vld [vmem:[#allocation7 + $0x18] sm:$0xf]
    %v380 = vld [vmem:[#allocation7 + $0x1c] sm:$0xf]
    %v381 = vld [vmem:[#allocation7 + $0x20] sm:$0xf]
    %v382 = vld [vmem:[#allocation7 + $0x24] sm:$0xf]
    %v383 = vld [vmem:[#allocation7 + $0x28] sm:$0xf]
    %v384 = vld [vmem:[#allocation7 + $0x2c] sm:$0xf]
    %v385 = vld [vmem:[#allocation7 + $0x30] sm:$0xf]
    %v386 = vld [vmem:[#allocation7 + $0x34] sm:$0xf]
    %v387 = vld [vmem:[#allocation7 + $0x38] sm:$0xf]
    %v388 = vld [vmem:[#allocation7 + $0x3c] sm:$0xf]
    %v389 = vld [vmem:[%s6] sm:$0x1]
    %v391 = vlaneseq
    %v392 = vshrl.u32 %v391, 7
    %v393 = vsub.s32 0, %v392
    %v394 = vrot.slane %v389, %v393
    %v412 = vunpack.c.l.b16 %v373
    %v413 = vunpack.c.l.b16 %v374
    %v414 = vunpack.c.l.b16 %v375
    %v415 = vunpack.c.l.b16 %v376
    %v416 = vunpack.c.l.b16 %v377
    %v417 = vunpack.c.l.b16 %v378
    %v418 = vunpack.c.l.b16 %v379
    %v419 = vunpack.c.l.b16 %v380
    %v420 = vunpack.c.l.b16 %v381
    %v421 = vunpack.c.l.b16 %v382
    %v422 = vunpack.c.l.b16 %v383
    %v423 = vunpack.c.l.b16 %v384
    %v424 = vunpack.c.l.b16 %v385
    %v425 = vunpack.c.l.b16 %v386
    %v426 = vunpack.c.l.b16 %v387
    %v427 = vunpack.c.l.b16 %v388
    %v428 = vpack.c.b16 %v413, %v412
    %v429 = vpack.c.b16 %v415, %v414
    %v430 = vpack.c.b16 %v417, %v416
    %v431 = vpack.c.b16 %v419, %v418
    %v432 = vpack.c.b16 %v421, %v420
    %v433 = vpack.c.b16 %v423, %v422
    %v434 = vpack.c.b16 %v425, %v424
    %v435 = vpack.c.b16 %v427, %v426
    %444 = vmatprep.subr.bf16.mxu0 0
    %445 = vmatpush1.bf16.msra.mxu0 %v428
    %446 = vmatprep.subr.bf16.mxu0 0
    %447 = vmatpush1.bf16.msra.mxu0 %v429
    %448 = vmatprep.subr.bf16.mxu0 0
    %449 = vmatpush1.bf16.msra.mxu0 %v430
    %450 = vmatprep.subr.bf16.mxu0 0
    %451 = vmatpush1.bf16.msra.mxu0 %v431
    %452 = vmatprep.subr.bf16.mxu0 0
    %453 = vmatpush1.bf16.msra.mxu0 %v432
    %454 = vmatprep.subr.bf16.mxu0 0
    %455 = vmatpush1.bf16.msra.mxu0 %v433
    %456 = vmatprep.subr.bf16.mxu0 0
    %457 = vmatpush1.bf16.msra.mxu0 %v434
    %458 = vmatprep.subr.bf16.mxu0 0
    %459 = vmatpush1.bf16.msra.mxu0 %v435
    %460 = vmatprep.subr.bf16.mxu0 0
    %461 = vmatpush1.bf16.msra.mxu0 0
    %462 = vmatprep.subr.bf16.mxu0 0
    %463 = vmatpush1.bf16.msra.mxu0 0
    %464 = vmatprep.subr.bf16.mxu0 0
    %465 = vmatpush1.bf16.msra.mxu0 0
    %466 = vmatprep.subr.bf16.mxu0 0
    %467 = vmatpush1.bf16.msra.mxu0 0
    %468 = vmatprep.subr.bf16.mxu0 0
    %469 = vmatpush1.bf16.msra.mxu0 0
    %470 = vmatprep.subr.bf16.mxu0 0
    %471 = vmatpush1.bf16.msra.mxu0 0
    %472 = vmatprep.subr.bf16.mxu0 0
    %473 = vmatpush1.bf16.msra.mxu0 0
    %474 = vmatprep.subr.bf16.mxu0 0
    %475 = vmatpush1.bf16.msra.mxu0 0
    %476 = vmatprep.mubr.bf16.mxu0 0
    %477 = vmatmul.mubr.bf16.gmra.mrb[0].mxu0 %v372
    %v478 = vpop.f32.mrb[0].mxu0
    %v479 = vadd.f32 %v394, %v478
    %v480 = vpop.f32.mrb[0].mxu0
    %v481 = vpop.f32.mrb[0].mxu0
    %v482 = vpop.f32.mrb[0].mxu0
    %483 = vdwg.mxu0
    %484 = vst [vmem:[%s7] sm:$0xff] %v479
    // Predicated region
    $region46: #{critic_forward.1} parent=1 // pred_check
      _
    $region47: #{critic_forward.1} parent=1 // pred_check_branch
      %486 = sbr.rel (0) target = $region49
    $region48: #{critic_forward.1} parent=1 // pred_region
      _
    $region49: #{critic_forward.1} parent=1 // pred_fallthru
      _
    // Predicated region
    $region50: #{critic_forward.1} parent=1 // pred_check
      _
    $region51: #{critic_forward.1} parent=1 // pred_check_branch
      %488 = sbr.rel (0) target = $region53
    $region52: #{critic_forward.1} parent=1 // pred_region
      _
    $region53: #{critic_forward.1} parent=1 // pred_fallthru
      _
    %489 = vsyncpa [#allocation3], 1
    %490 = vsyncpa [#allocation5], 1
    %491 = vsyncpa [#allocation8], 1

</llo_original>
